<compile_context>
chip_gen: v6e
topology: v6e:2x2x1
jax: 0.10.0
libtpu: 0.0.40
codegen_flags: <defaults>
</compile_context>

<pallas_src>
import functools

import jax
import jax.numpy as jnp
from jax.experimental import pallas as pl
from jax.experimental.pallas import tpu as pltpu


def _ncp_cell_kernel(x_ref, h_prev_ref,
                     w_in_ref, w_rec_ref, bias_ref,
                     w_out_row_ref, b_out_ref,
                     y_ref, h_out_ref):
    # Pre-activation: both projections on the MXU, single folded bias.
    pre = (jnp.dot(x_ref[...], w_in_ref[...],
                   preferred_element_type=jnp.float32)
           + jnp.dot(h_prev_ref[...], w_rec_ref[...],
                     preferred_element_type=jnp.float32)
           + bias_ref[...])
    h = jnp.tanh(pre)                      # EUP
    h_out_ref[...] = h.astype(h_out_ref.dtype)

    # Output head (out_features == 1): VPU multiply + XLU lane reduction
    # avoids an N=1 MXU matmul and a lane-width-1 (masked) store.
    y = jnp.sum(h * w_out_row_ref[...], axis=-1, keepdims=True) + b_out_ref[0]
    # Broadcast into a lane-dense (TB, 128) block; wrapper slices column 0.
    y_ref[...] = jnp.broadcast_to(y, y_ref.shape).astype(y_ref.dtype)


def prepare_params(params):
    """One-time parameter preparation (do NOT call per step)."""
    return {
        "w_in_t": jnp.asarray(params["w_in"]).T,                    # (I, H)
        "w_rec_t": jnp.asarray(params["w_rec"]).T,                  # (H, H)
        "bias": (jnp.asarray(params["b_in"])
                 + jnp.asarray(params["b_rec"]))[None, :],          # (1, H)
        "w_out_row": jnp.asarray(params["w_out"]).reshape(1, -1),   # (1, H)
        "b_out": jnp.asarray(params["b_out"]).reshape(1)
                    .astype(jnp.float32),                           # (1,) SMEM
    }


def ncp_cell(x, h_prev, prepped, *, batch_tile=256):
    """Pallas NCPCell forward. Returns (y, h); y has shape (B, 1)."""
    B, input_size = x.shape
    hidden_size = h_prev.shape[1]
    assert batch_tile % 8 == 0

    # Batch tiling: one full-array tile for small B, otherwise `batch_tile`
    # row tiles (multiple of 8) with zero-padding of the trailing batch rows.
    if B <= batch_tile:
        tb, b_pad = B, B
    else:
        tb = batch_tile
        b_pad = ((B + tb - 1) // tb) * tb
    if b_pad != B:
        pad = b_pad - B
        x = jnp.pad(x, ((0, pad), (0, 0)))
        h_prev = jnp.pad(h_prev, ((0, pad), (0, 0)))
    num_tiles = b_pad // tb

    batch_map = lambda i: (i, 0)   # activation tiles follow the batch grid
    const_map = lambda i: (0, 0)   # weights/bias stay resident in VMEM

    y_pad, h_out = pl.pallas_call(
        _ncp_cell_kernel,
        out_shape=(
            jax.ShapeDtypeStruct((b_pad, 128), x.dtype),
            jax.ShapeDtypeStruct((b_pad, hidden_size), x.dtype),
        ),
        grid=(num_tiles,),
        in_specs=[
            pl.BlockSpec((tb, input_size), batch_map),            # x
            pl.BlockSpec((tb, hidden_size), batch_map),           # h_prev
            pl.BlockSpec((input_size, hidden_size), const_map),   # W_in^T
            pl.BlockSpec((hidden_size, hidden_size), const_map),  # W_rec^T
            pl.BlockSpec((1, hidden_size), const_map),            # b_in + b_rec
            pl.BlockSpec((1, hidden_size), const_map),            # W_out row
            pl.BlockSpec(memory_space=pltpu.MemorySpace.SMEM),    # b_out scalar
        ],
        out_specs=(
            pl.BlockSpec((tb, 128), batch_map),                   # y (lane-dense)
            pl.BlockSpec((tb, hidden_size), batch_map),           # h
        ),
        compiler_params=pltpu.CompilerParams(
            dimension_semantics=("parallel",),
        ),
    )(x, h_prev,
      prepped["w_in_t"], prepped["w_rec_t"], prepped["bias"],
      prepped["w_out_row"], prepped["b_out"])

    return y_pad[:B, :1], h_out[:B]


def _reference(x, h_prev, params):
    h = jnp.tanh(x @ params["w_in"].T + params["b_in"]
                 + h_prev @ params["w_rec"].T + params["b_rec"])
    y = h @ params["w_out"].T + params["b_out"]
    return y, h


def init_params(key, input_size, hidden_size, dtype=jnp.float32):
    """Deterministic init mirroring nn.Linear shapes (out_features, in_features)."""
    ks = jax.random.split(key, 6)

    def u(k, shape, fan_in):
        bound = 1.0 / jnp.sqrt(fan_in)
        return jax.random.uniform(k, shape, dtype, -bound, bound)

    return {
        "w_in":  u(ks[0], (hidden_size, input_size), input_size),
        "b_in":  u(ks[1], (hidden_size,), input_size),
        "w_rec": u(ks[2], (hidden_size, hidden_size), hidden_size),
        "b_rec": u(ks[3], (hidden_size,), hidden_size),
        "w_out": u(ks[4], (1, hidden_size), hidden_size),
        "b_out": u(ks[5], (1,), hidden_size),
    }


if __name__ == "__main__":
    key = jax.random.PRNGKey(0)
    B, input_size, hidden_size = 2, 16, 32

    k_x, k_h, k_p = jax.random.split(key, 3)
    x = jax.random.normal(k_x, (B, input_size), jnp.float32)
    h_prev = jax.random.normal(k_h, (B, hidden_size), jnp.float32)
    params = init_params(k_p, input_size, hidden_size)

    # One-time parameter prep (transpose / bias folding happens here, not per step).
    prepped = prepare_params(params)

    step = jax.jit(functools.partial(ncp_cell))
    y, h = step(x, h_prev, prepped)
    jax.block_until_ready((y, h))

    y_ref, h_ref = _reference(x, h_prev, params)
    assert y.shape == (B, 1) and h.shape == (B, hidden_size)
    assert jnp.allclose(y, y_ref, atol=1e-5, rtol=1e-5)
    assert jnp.allclose(h, h_ref, atol=1e-5, rtol=1e-5)

    print("KERNEL_OK")
</pallas_src>

<mosaic_0001>
module attributes {stable_mosaic.version = 11 : i64} {
  func.func @_ncp_cell_kernel(%arg0: i32, %arg1: memref<2x16xf32, #tpu.memory_space<vmem>>, %arg2: memref<2x32xf32, #tpu.memory_space<vmem>>, %arg3: memref<16x32xf32, #tpu.memory_space<vmem>>, %arg4: memref<32x32xf32, #tpu.memory_space<vmem>>, %arg5: memref<1x32xf32, #tpu.memory_space<vmem>>, %arg6: memref<1x32xf32, #tpu.memory_space<vmem>>, %arg7: memref<1xf32, #tpu.memory_space<smem>>, %arg8: memref<2x128xf32, #tpu.memory_space<vmem>>, %arg9: memref<2x32xf32, #tpu.memory_space<vmem>>) attributes {dimension_semantics = [#tpu.dimension_semantics<parallel>], iteration_bounds = array<i64: 1>, scalar_prefetch = 0 : i64, scratch_operands = 0 : i64, tpu.core_type = #tpu.core_type<tc>, window_params = [{transform_indices = @transform_0, window_bounds = array<i64: 2, 16>}, {transform_indices = @transform_1, window_bounds = array<i64: 2, 32>}, {pipeline_mode = #tpu.pipeline_mode<synchronous>, transform_indices = @transform_2, window_bounds = array<i64: 16, 32>}, {pipeline_mode = #tpu.pipeline_mode<synchronous>, transform_indices = @transform_3, window_bounds = array<i64: 32, 32>}, {pipeline_mode = #tpu.pipeline_mode<synchronous>, transform_indices = @transform_4, window_bounds = array<i64: 1, 32>}, {pipeline_mode = #tpu.pipeline_mode<synchronous>, transform_indices = @transform_5, window_bounds = array<i64: 1, 32>}, {transform_indices = @transform_6, window_bounds = array<i64: 1>}, {transform_indices = @transform_7, window_bounds = array<i64: 2, 128>}, {transform_indices = @transform_8, window_bounds = array<i64: 2, 32>}]} {
    %c0 = arith.constant 0 : index
    %c0_0 = arith.constant 0 : index
    %0 = vector.load %arg1[%c0, %c0_0] : memref<2x16xf32, #tpu.memory_space<vmem>>, vector<2x16xf32>
    %c0_1 = arith.constant 0 : index
    %c0_2 = arith.constant 0 : index
    %1 = vector.load %arg3[%c0_1, %c0_2] : memref<16x32xf32, #tpu.memory_space<vmem>>, vector<16x32xf32>
    %cst = arith.constant dense<0.000000e+00> : vector<2x32xf32>
    %2 = tpu.matmul %0, %1, %cst {dimension_numbers = #tpu.dot_dimension_numbers<[1], [0], [0], [1], [0, 0, 1, 1], [], []>} : vector<2x16xf32>, vector<16x32xf32>, vector<2x32xf32> -> vector<2x32xf32>
    %c0_3 = arith.constant 0 : index
    %c0_4 = arith.constant 0 : index
    %3 = vector.load %arg2[%c0_3, %c0_4] : memref<2x32xf32, #tpu.memory_space<vmem>>, vector<2x32xf32>
    %c0_5 = arith.constant 0 : index
    %c0_6 = arith.constant 0 : index
    %4 = vector.load %arg4[%c0_5, %c0_6] : memref<32x32xf32, #tpu.memory_space<vmem>>, vector<32x32xf32>
    %cst_7 = arith.constant dense<0.000000e+00> : vector<2x32xf32>
    %5 = tpu.matmul %3, %4, %cst_7 {dimension_numbers = #tpu.dot_dimension_numbers<[1], [0], [0], [1], [0, 0, 1, 1], [], []>} : vector<2x32xf32>, vector<32x32xf32>, vector<2x32xf32> -> vector<2x32xf32>
    %6 = arith.addf %2, %5 : vector<2x32xf32>
    %c0_8 = arith.constant 0 : index
    %c0_9 = arith.constant 0 : index
    %7 = vector.load %arg5[%c0_8, %c0_9] : memref<1x32xf32, #tpu.memory_space<vmem>>, vector<1x32xf32>
    %8 = vector.broadcast %7 : vector<1x32xf32> to vector<2x32xf32>
    %9 = arith.addf %6, %8 : vector<2x32xf32>
    %10 = math.tanh %9 : vector<2x32xf32>
    %c0_10 = arith.constant 0 : index
    %c0_11 = arith.constant 0 : index
    %11 = vector.load %arg9[%c0_10, %c0_11] : memref<2x32xf32, #tpu.memory_space<vmem>>, vector<2x32xf32>
    tpu.vector_store %arg9[%c0_10, %c0_11], %10 {strides = array<i32>} : memref<2x32xf32, #tpu.memory_space<vmem>>, vector<2x32xf32>,
    %c0_12 = arith.constant 0 : index
    %c0_13 = arith.constant 0 : index
    %12 = vector.load %arg6[%c0_12, %c0_13] : memref<1x32xf32, #tpu.memory_space<vmem>>, vector<1x32xf32>
    %13 = vector.broadcast %12 : vector<1x32xf32> to vector<2x32xf32>
    %14 = arith.mulf %10, %13 : vector<2x32xf32>
    %cst_14 = arith.constant dense<0.000000e+00> : vector<2xf32>
    %15 = vector.multi_reduction <add>, %14, %cst_14 [1] : vector<2x32xf32> to vector<2xf32>
    %16 = vector.shape_cast %15 : vector<2xf32> to vector<2x1xf32>
    %c0_15 = arith.constant 0 : index
    %17 = memref.load %arg7[%c0_15] : memref<1xf32, #tpu.memory_space<smem>>
    %18 = vector.broadcast %17 : f32 to vector<2x1xf32>
    %19 = arith.addf %16, %18 : vector<2x1xf32>
    %20 = vector.shape_cast %19 : vector<2x1xf32> to vector<2x1xf32>
    %21 = vector.broadcast %20 : vector<2x1xf32> to vector<2x128xf32>
    %c0_16 = arith.constant 0 : index
    %c0_17 = arith.constant 0 : index
    %22 = vector.load %arg8[%c0_16, %c0_17] : memref<2x128xf32, #tpu.memory_space<vmem>>, vector<2x128xf32>
    tpu.vector_store %arg8[%c0_16, %c0_17], %21 {strides = array<i32>} : memref<2x128xf32, #tpu.memory_space<vmem>>, vector<2x128xf32>,
    return
  }
  func.func @transform_0(%arg0: i32) -> (i32, i32) {
    %c0_i32 = arith.constant 0 : i32
    %c0_i32_0 = arith.constant 0 : i32
    return %arg0, %c0_i32 : i32, i32
  }
  func.func @transform_1(%arg0: i32) -> (i32, i32) {
    %c0_i32 = arith.constant 0 : i32
    %c0_i32_0 = arith.constant 0 : i32
    return %arg0, %c0_i32 : i32, i32
  }
  func.func @transform_2(%arg0: i32) -> (i32, i32) {
    %c0_i32 = arith.constant 0 : i32
    %c0_i32_0 = arith.constant 0 : i32
    %c0_i32_1 = arith.constant 0 : i32
    return %c0_i32, %c0_i32_0 : i32, i32
  }
  func.func @transform_3(%arg0: i32) -> (i32, i32) {
    %c0_i32 = arith.constant 0 : i32
    %c0_i32_0 = arith.constant 0 : i32
    %c0_i32_1 = arith.constant 0 : i32
    return %c0_i32, %c0_i32_0 : i32, i32
  }
  func.func @transform_4(%arg0: i32) -> (i32, i32) {
    %c0_i32 = arith.constant 0 : i32
    %c0_i32_0 = arith.constant 0 : i32
    %c0_i32_1 = arith.constant 0 : i32
    return %c0_i32, %c0_i32_0 : i32, i32
  }
  func.func @transform_5(%arg0: i32) -> (i32, i32) {
    %c0_i32 = arith.constant 0 : i32
    %c0_i32_0 = arith.constant 0 : i32
    %c0_i32_1 = arith.constant 0 : i32
    return %c0_i32, %c0_i32_0 : i32, i32
  }
  func.func @transform_6(%arg0: i32) -> i32 {
    %c0_i32 = arith.constant 0 : i32
    %c0_i32_0 = arith.constant 0 : i32
    return %c0_i32 : i32
  }
  func.func @transform_7(%arg0: i32) -> (i32, i32) {
    %c0_i32 = arith.constant 0 : i32
    %c0_i32_0 = arith.constant 0 : i32
    return %arg0, %c0_i32 : i32, i32
  }
  func.func @transform_8(%arg0: i32) -> (i32, i32) {
    %c0_i32 = arith.constant 0 : i32
    %c0_i32_0 = arith.constant 0 : i32
    return %arg0, %c0_i32 : i32, i32
  }
}

</mosaic_0001>

<llo_original>
// kernel: ncp_cell.1
$region0: #{ncp_cell.1}
  #allocation0 [shape = 'u32[]', space=smem, size = 0x4, offset = 0x4, fixed_abs, tag = 'smem constant byte address 0x4 - core index']
  #allocation1 [shape = 'u32[144,128]{1,0:T(1,128)}', space=vmem, size = 0x12000, scoped, tag = 'internal scratch']
  #allocation2 [shape = 'f32[1]{0:T(128)S(6)}', space=smem, size = 0x200, scoped, tag = 'scoped memory for ncp_cell.1']
  %s0 = inlined_call_operand.vmem [shape: f32[2,16], index: 0, kind: input, shape index: {}]
  %s1 = inlined_call_operand.hbm [shape: f32[2,32], index: 1, kind: input, shape index: {}]
  %s2 = inlined_call_operand.hbm [shape: f32[16,32], index: 2, kind: input, shape index: {}]
  %s3 = inlined_call_operand.hbm [shape: f32[32,32], index: 3, kind: input, shape index: {}]
  %s4 = inlined_call_operand.vmem [shape: f32[1,32], index: 4, kind: input, shape index: {}]
  %s5 = inlined_call_operand.vmem [shape: f32[1,32], index: 5, kind: input, shape index: {}]
  %s6 = inlined_call_operand.<no memory space> [shape: f32[1], index: 6, kind: input, shape index: {}]
  %s7 = inlined_call_operand.vmem [shape: f32[2,128], index: 7, kind: output, shape index: {0}]
  %s8 = inlined_call_operand.hbm [shape: f32[2,32], index: 8, kind: output, shape index: {1}]
  %9 = xla_tuple %s7, %s8
  %s10 = sld [smem:[#allocation0]]
  $region58: #{ncp_cell.1} parent=0
    _
  %s12 = ssub.s32 1, %s10
  %s13 = scalar_select 0, %s12, %s10
  %14 = sst [smem:[#allocation2]] %s6
  $region1: #{ncp_cell.1} parent=0
    #allocation3 [shape = 'u8[1024]{0}', space=vmem, size = 0x400, scoped, tag = 'input window, operand 1, single buffered']
    #allocation4 [shape = 's32[1]{0}', space=sflag, size = 0x4, scoped, tag = 'scoped memory for ncp_cell.1']
    #allocation5 [shape = 's32[1]{0}', space=sflag, size = 0x4, scoped, tag = 'scoped memory for ncp_cell.1']
    #allocation6 [shape = 'u8[8192]{0}', space=vmem, size = 0x2000, scoped, tag = 'input window, operand 2, single buffered']
    #allocation7 [shape = 's32[1]{0}', space=sflag, size = 0x4, scoped, tag = 'scoped memory for ncp_cell.1']
    #allocation8 [shape = 'u8[16384]{0}', space=vmem, size = 0x4000, scoped, tag = 'input window, operand 3, single buffered']
    #allocation9 [shape = 'u8[1024]{0}', space=vmem, size = 0x400, scoped, tag = 'output window, operand 1, single buffered']
    %15 = vsyncpa [#allocation4], 0
    %16 = vsyncpa [#allocation7], 0
    %17 = vsyncpa [#allocation5], 0
    // Predicated region
    $region2: #{ncp_cell.1} parent=1 // pred_check
      _
    $region3: #{ncp_cell.1} parent=1 // pred_check_branch
      %19 = sbr.rel (0) target = $region5
    $region4: #{ncp_cell.1} parent=1 // pred_region
      _
    $region5: #{ncp_cell.1} parent=1 // pred_fallthru
      _
    // Predicated region
    $region6: #{ncp_cell.1} parent=1 // pred_check
      _
    $region7: #{ncp_cell.1} parent=1 // pred_check_branch
      %21 = sbr.rel (0) target = $region9
    $region8: #{ncp_cell.1} parent=1 // pred_region
      %s23 = ssub.s32 32, 32
      %24 = vsyncadd [#allocation4], %s23
      %s26 = sshll.u32 [#allocation3], 4
      %s27 = int_to_ptr.vmem [resolvable:$true] %s26
      %29 = dma.hbm_to_vmem [thread:$0]  %s1, 32, %s27, [#allocation4]
    $region9: #{ncp_cell.1} parent=1 // pred_fallthru
      _
    // Predicated region
    $region10: #{ncp_cell.1} parent=1 // pred_check
      _
    $region11: #{ncp_cell.1} parent=1 // pred_check_branch
      %31 = sbr.rel (0) target = $region13
    $region12: #{ncp_cell.1} parent=1 // pred_region
      %s33 = ssub.s32 256, 256
      %34 = vsyncadd [#allocation7], %s33
      %s35 = sshll.u32 [#allocation6], 4
      %s36 = int_to_ptr.vmem [resolvable:$true] %s35
      %41 = dma.hbm_to_vmem [thread:$0]  %s2, 256, %s36, [#allocation7], 128, 128, 8
    $region13: #{ncp_cell.1} parent=1 // pred_fallthru
      _
    // Predicated region
    $region14: #{ncp_cell.1} parent=1 // pred_check
      _
    $region15: #{ncp_cell.1} parent=1 // pred_check_branch
      %43 = sbr.rel (0) target = $region17
    $region16: #{ncp_cell.1} parent=1 // pred_region
      %s45 = ssub.s32 512, 512
      %46 = vsyncadd [#allocation7], %s45
      %s47 = sshll.u32 [#allocation8], 4
      %s48 = int_to_ptr.vmem [resolvable:$true] %s47
      %53 = dma.hbm_to_vmem [thread:$0]  %s3, 512, %s48, [#allocation7], 128, 128, 8
    $region17: #{ncp_cell.1} parent=1 // pred_fallthru
      _
    // Predicated region
    $region18: #{ncp_cell.1} parent=1 // pred_check
      _
    $region19: #{ncp_cell.1} parent=1 // pred_check_branch
      %55 = sbr.rel (0) target = $region21
    $region20: #{ncp_cell.1} parent=1 // pred_region
      _
    $region21: #{ncp_cell.1} parent=1 // pred_fallthru
      _
    // Predicated region
    $region22: #{ncp_cell.1} parent=1 // pred_check
      _
    $region23: #{ncp_cell.1} parent=1 // pred_check_branch
      %57 = sbr.rel (0) target = $region25
    $region24: #{ncp_cell.1} parent=1 // pred_region
      _
    $region25: #{ncp_cell.1} parent=1 // pred_fallthru
      _
    // Predicated region
    $region26: #{ncp_cell.1} parent=1 // pred_check
      _
    $region27: #{ncp_cell.1} parent=1 // pred_check_branch
      %59 = sbr.rel (0) target = $region29
    $region28: #{ncp_cell.1} parent=1 // pred_region
      _
    $region29: #{ncp_cell.1} parent=1 // pred_fallthru
      _
    // Predicated region
    $region30: #{ncp_cell.1} parent=1 // pred_check
      _
    $region31: #{ncp_cell.1} parent=1 // pred_check_branch
      %61 = sbr.rel (0) target = $region33
    $region32: #{ncp_cell.1} parent=1 // pred_region
      %62 = dma.done [#allocation4], 32
    $region33: #{ncp_cell.1} parent=1 // pred_fallthru
      _
    // Predicated region
    $region34: #{ncp_cell.1} parent=1 // pred_check
      _
    $region35: #{ncp_cell.1} parent=1 // pred_check_branch
      %64 = sbr.rel (0) target = $region37
    $region36: #{ncp_cell.1} parent=1 // pred_region
      %65 = dma.done [#allocation7], 256
    $region37: #{ncp_cell.1} parent=1 // pred_fallthru
      _
    // Predicated region
    $region38: #{ncp_cell.1} parent=1 // pred_check
      _
    $region39: #{ncp_cell.1} parent=1 // pred_check_branch
      %67 = sbr.rel (0) target = $region41
    $region40: #{ncp_cell.1} parent=1 // pred_region
      %68 = dma.done [#allocation7], 512
    $region41: #{ncp_cell.1} parent=1 // pred_fallthru
      _
    %v69 = vld [vmem:[%s0] sm:$0x3]
    %v70 = vld [vmem:[#allocation6] sm:$0xff]
    %v71 = vld [vmem:[#allocation6 + $0x8] sm:$0xff]
    %v72 = vld [vmem:[#allocation3] sm:$0x3]
    %v73 = vld [vmem:[#allocation8] sm:$0xff]
    %v74 = vld [vmem:[#allocation8 + $0x8] sm:$0xff]
    %v75 = vld [vmem:[#allocation8 + $0x10] sm:$0xff]
    %v76 = vld [vmem:[#allocation8 + $0x18] sm:$0xff]
    %vm77 = vcmask 261120
    %v79 = vsel %vm77, %v72, 0
    %81 = vmatprep.subr.mxu0 0.0
    %82 = vmatpush1.msra.mxu0 0.0
    %83 = vmatprep.subr.mxu0 0.0
    %84 = vmatpush1.msra.mxu0 0.0
    %85 = vmatprep.subr.mxu0 0.0
    %86 = vmatpush1.msra.mxu0 0.0
    %87 = vmatprep.subr.mxu0 0.0
    %88 = vmatpush1.msra.mxu0 0.0
    %89 = vmatprep.subr.mxu0 0.0
    %90 = vmatpush1.msra.mxu0 0.0
    %91 = vmatprep.subr.mxu0 0.0
    %92 = vmatpush1.msra.mxu0 0.0
    %93 = vmatprep.subr.mxu0 0.0
    %94 = vmatpush1.msra.mxu0 0.0
    %95 = vmatprep.subr.mxu0 0.0
    %96 = vmatpush1.msra.mxu0 0.0
    %97 = vmatprep.subr.mxu0 0.0
    %98 = vmatpush1.msra.mxu0 0.0
    %99 = vmatprep.subr.mxu0 0.0
    %100 = vmatpush1.msra.mxu0 0.0
    %101 = vmatprep.subr.mxu0 0.0
    %102 = vmatpush1.msra.mxu0 0.0
    %103 = vmatprep.subr.mxu0 0.0
    %104 = vmatpush1.msra.mxu0 0.0
    %105 = vmatprep.subr.mxu0 0.0
    %106 = vmatpush1.msra.mxu0 %v76
    %107 = vmatprep.subr.mxu0 0.0
    %108 = vmatpush1.msra.mxu0 %v75
    %109 = vmatprep.subr.mxu0 0.0
    %110 = vmatpush1.msra.mxu0 %v74
    %111 = vmatprep.subr.mxu0 0.0
    %112 = vmatpush1.msra.mxu0 %v73
    %113 = vmatprep.subr.mxu0 0.0
    %114 = vmatpush2.msra.mxu0 0.0
    %115 = vmatprep.subr.mxu0 0.0
    %116 = vmatpush2.msra.mxu0 0.0
    %117 = vmatprep.subr.mxu0 0.0
    %118 = vmatpush2.msra.mxu0 0.0
    %119 = vmatprep.subr.mxu0 0.0
    %120 = vmatpush2.msra.mxu0 0.0
    %121 = vmatprep.subr.mxu0 0.0
    %122 = vmatpush2.msra.mxu0 0.0
    %123 = vmatprep.subr.mxu0 0.0
    %124 = vmatpush2.msra.mxu0 0.0
    %125 = vmatprep.subr.mxu0 0.0
    %126 = vmatpush2.msra.mxu0 0.0
    %127 = vmatprep.subr.mxu0 0.0
    %128 = vmatpush2.msra.mxu0 0.0
    %129 = vmatprep.subr.mxu0 0.0
    %130 = vmatpush2.msra.mxu0 0.0
    %131 = vmatprep.subr.mxu0 0.0
    %132 = vmatpush2.msra.mxu0 0.0
    %133 = vmatprep.subr.mxu0 0.0
    %134 = vmatpush2.msra.mxu0 0.0
    %135 = vmatprep.subr.mxu0 0.0
    %136 = vmatpush2.msra.mxu0 0.0
    %137 = vmatprep.subr.mxu0 0.0
    %138 = vmatpush2.msra.mxu0 0.0
    %139 = vmatprep.subr.mxu0 0.0
    %140 = vmatpush2.msra.mxu0 0.0
    %141 = vmatprep.subr.mxu0 0.0
    %142 = vmatpush2.msra.mxu0 0.0
    %143 = vmatprep.subr.mxu0 0.0
    %144 = vmatpush2.msra.mxu0 0.0
    %145 = vmatprep.mubr.f32.mxu0 0.0
    %146 = vmatmul.mubr.f32.gmra.mxu0 %v79
    %v147 = vpop.f32.mrf.mxu0
    %v148 = vadd.f32 0.0, %v147
    %v149 = vpop.f32.mrf.mxu0
    %150 = vdwg.mxu0
    %vm151 = vcmask 130048
    %v153 = vsel %vm151, %v69, 0
    %155 = vmatprep.subr.mxu0 0.0
    %156 = vmatpush1.msra.mxu0 0.0
    %157 = vmatprep.subr.mxu0 0.0
    %158 = vmatpush1.msra.mxu0 0.0
    %159 = vmatprep.subr.mxu0 0.0
    %160 = vmatpush1.msra.mxu0 0.0
    %161 = vmatprep.subr.mxu0 0.0
    %162 = vmatpush1.msra.mxu0 0.0
    %163 = vmatprep.subr.mxu0 0.0
    %164 = vmatpush1.msra.mxu0 0.0
    %165 = vmatprep.subr.mxu0 0.0
    %166 = vmatpush1.msra.mxu0 0.0
    %167 = vmatprep.subr.mxu0 0.0
    %168 = vmatpush1.msra.mxu0 0.0
    %169 = vmatprep.subr.mxu0 0.0
    %170 = vmatpush1.msra.mxu0 0.0
    %171 = vmatprep.subr.mxu0 0.0
    %172 = vmatpush1.msra.mxu0 0.0
    %173 = vmatprep.subr.mxu0 0.0
    %174 = vmatpush1.msra.mxu0 0.0
    %175 = vmatprep.subr.mxu0 0.0
    %176 = vmatpush1.msra.mxu0 0.0
    %177 = vmatprep.subr.mxu0 0.0
    %178 = vmatpush1.msra.mxu0 0.0
    %179 = vmatprep.subr.mxu0 0.0
    %180 = vmatpush1.msra.mxu0 0.0
    %181 = vmatprep.subr.mxu0 0.0
    %182 = vmatpush1.msra.mxu0 0.0
    %183 = vmatprep.subr.mxu0 0.0
    %184 = vmatpush1.msra.mxu0 %v71
    %185 = vmatprep.subr.mxu0 0.0
    %186 = vmatpush1.msra.mxu0 %v70
    %187 = vmatprep.subr.mxu0 0.0
    %188 = vmatpush2.msra.mxu0 0.0
    %189 = vmatprep.subr.mxu0 0.0
    %190 = vmatpush2.msra.mxu0 0.0
    %191 = vmatprep.subr.mxu0 0.0
    %192 = vmatpush2.msra.mxu0 0.0
    %193 = vmatprep.subr.mxu0 0.0
    %194 = vmatpush2.msra.mxu0 0.0
    %195 = vmatprep.subr.mxu0 0.0
    %196 = vmatpush2.msra.mxu0 0.0
    %197 = vmatprep.subr.mxu0 0.0
    %198 = vmatpush2.msra.mxu0 0.0
    %199 = vmatprep.subr.mxu0 0.0
    %200 = vmatpush2.msra.mxu0 0.0
    %201 = vmatprep.subr.mxu0 0.0
    %202 = vmatpush2.msra.mxu0 0.0
    %203 = vmatprep.subr.mxu0 0.0
    %204 = vmatpush2.msra.mxu0 0.0
    %205 = vmatprep.subr.mxu0 0.0
    %206 = vmatpush2.msra.mxu0 0.0
    %207 = vmatprep.subr.mxu0 0.0
    %208 = vmatpush2.msra.mxu0 0.0
    %209 = vmatprep.subr.mxu0 0.0
    %210 = vmatpush2.msra.mxu0 0.0
    %211 = vmatprep.subr.mxu0 0.0
    %212 = vmatpush2.msra.mxu0 0.0
    %213 = vmatprep.subr.mxu0 0.0
    %214 = vmatpush2.msra.mxu0 0.0
    %215 = vmatprep.subr.mxu0 0.0
    %216 = vmatpush2.msra.mxu0 0.0
    %217 = vmatprep.subr.mxu0 0.0
    %218 = vmatpush2.msra.mxu0 0.0
    %219 = vmatprep.mubr.f32.mxu0 0.0
    %220 = vmatmul.mubr.f32.gmra.mxu0 %v153
    %v221 = vpop.f32.mrf.mxu0
    %v222 = vadd.f32 %v148, %v221
    %v223 = vpop.f32.mrf.mxu0
    %224 = vdwg.mxu0
    %v225 = vld [vmem:[%s4] sm:$0x1]
    %v227 = vlaneseq
    %v228 = vshrl.u32 %v227, 7
    %v229 = vsub.s32 0, %v228
    %v230 = vrot.slane %v225, %v229
    %v232 = vadd.f32 %v222, %v230
    %v233 = vtanh.pop %v232
    %vm234 = vcmask 254976
    %235 = vst.msk [vmem:[#allocation9] sm:$0x3] %vm234, %v233
    %v236 = vld [vmem:[%s5] sm:$0x1]
    %v238 = vlaneseq
    %v239 = vshrl.u32 %v238, 7
    %v240 = vsub.s32 0, %v239
    %v241 = vrot.slane %v236, %v240
    %v243 = vmul.f32 %v233, %v241
    %v244 = vsel %vm234, %v243, 0.0
    %245 = vadd.xlane.f32.xlu0 %v244
    %v246 = vpop.xlane.xlu0 %245
    %s247 = sld [smem:[#allocation2]]
    %v248 = vstv %s247
    %v249 = vadd.f32 %v246, %v248
    %250 = vst [vmem:[%s7] sm:$0x3] %v249
    // Predicated region
    $region42: #{ncp_cell.1} parent=1 // pred_check
      _
    $region43: #{ncp_cell.1} parent=1 // pred_check_branch
      %252 = sbr.rel (0) target = $region45
    $region44: #{ncp_cell.1} parent=1 // pred_region
      _
    $region45: #{ncp_cell.1} parent=1 // pred_fallthru
      _
    // Predicated region
    $region46: #{ncp_cell.1} parent=1 // pred_check
      _
    $region47: #{ncp_cell.1} parent=1 // pred_check_branch
      %254 = sbr.rel (0) target = $region49
    $region48: #{ncp_cell.1} parent=1 // pred_region
      %s256 = ssub.s32 32, 32
      %257 = vsyncadd [#allocation5], %s256
      %s259 = sshll.u32 [#allocation9], 4
      %s260 = int_to_ptr.vmem [resolvable:$true] %s259
      %262 = dma.vmem_to_hbm [thread:$0]  %s260, 32, %s8, [#allocation5]
    $region49: #{ncp_cell.1} parent=1 // pred_fallthru
      _
    // Predicated region
    $region50: #{ncp_cell.1} parent=1 // pred_check
      _
    $region51: #{ncp_cell.1} parent=1 // pred_check_branch
      %264 = sbr.rel (0) target = $region53
    $region52: #{ncp_cell.1} parent=1 // pred_region
      _
    $region53: #{ncp_cell.1} parent=1 // pred_fallthru
      _
    // Predicated region
    $region54: #{ncp_cell.1} parent=1 // pred_check
      _
    $region55: #{ncp_cell.1} parent=1 // pred_check_branch
      %266 = sbr.rel (0) target = $region57
    $region56: #{ncp_cell.1} parent=1 // pred_region
      %267 = dma.done [#allocation5], 32
    $region57: #{ncp_cell.1} parent=1 // pred_fallthru
      _
    %268 = vsyncpa [#allocation4], 1
    %269 = vsyncpa [#allocation7], 1
    %270 = vsyncpa [#allocation5], 1

</llo_original>
